<compile_context>
chip_gen: v5e
topology: v5e:2x2
jax: 0.10.0
libtpu: 0.0.40
codegen_flags: <defaults>
</compile_context>

<pallas_src>
import functools

import jax
import jax.numpy as jnp
from jax import lax
from jax.experimental import pallas as pl
from jax.experimental.pallas import tpu as pltpu

HEAD_PAD = 128  # lane-dense width of the fused head output / q block


def dueling_kernel(x_ref, w1_ref, b1_ref, w2_ref, b2_ref, w3_ref, b3_ref,
                   wh_ref, bh_ref, q_ref, *, num_actions):
    cd = x_ref.dtype  # compute dtype fed to the MXU (bf16 or f32)

    # pre: Linear(in_ch,16) -> ReLU -> Linear(16,64) -> ReLU   (f32 accumulate)
    h = jnp.dot(x_ref[...], w1_ref[...], preferred_element_type=jnp.float32) + b1_ref[...]
    h = jnp.maximum(h, 0.0).astype(cd)
    h = jnp.dot(h, w2_ref[...], preferred_element_type=jnp.float32) + b2_ref[...]
    h = jnp.maximum(h, 0.0).astype(cd)
    # lin: Linear(64,128) -> ReLU
    h = jnp.dot(h, w3_ref[...], preferred_element_type=jnp.float32) + b3_ref[...]
    h = jnp.maximum(h, 0.0).astype(cd)

    # fused heads: columns [0, A) = action_value, column A = state_value,
    # columns (A, 128) = zero-padded. One MXU pass instead of two.
    head = jnp.dot(h, wh_ref[...], preferred_element_type=jnp.float32) + bh_ref[...]

    lane = lax.broadcasted_iota(jnp.int32, head.shape, 1)
    a_mask = lane < num_actions
    sv_mask = lane == num_actions

    a_mean = jnp.sum(jnp.where(a_mask, head, 0.0), axis=-1, keepdims=True) * (1.0 / num_actions)
    sv = jnp.sum(jnp.where(sv_mask, head, 0.0), axis=-1, keepdims=True)

    # dueling combine: q = V + (A - mean(A));  pad lanes are written as 0 and
    # sliced off in the wrapper (keeps the store unmasked / lane-dense).
    q = jnp.where(a_mask, head - a_mean + sv, 0.0)
    q_ref[...] = q.astype(q_ref.dtype)


def dueling_forward(obs, params, *, tile_b=512, compute_dtype=jnp.bfloat16):
    B, in_ch = obs.shape
    num_actions = params["wa"].shape[1]
    hidden = params["w3"].shape[1]
    assert num_actions + 1 <= HEAD_PAD

    # --- pack the fused, lane-padded head weight/bias (f32 math done once on host) ---
    wh = jnp.zeros((hidden, HEAD_PAD), jnp.float32)
    wh = wh.at[:, :num_actions].set(params["wa"])
    wh = wh.at[:, num_actions:num_actions + 1].set(params["ws"])
    bh = jnp.zeros((1, HEAD_PAD), jnp.float32)
    bh = bh.at[:, :num_actions].set(params["ba"])
    bh = bh.at[:, num_actions:num_actions + 1].set(params["bs"])

    # --- MXU operands in bf16 (or f32), biases stay f32 for exact add/ReLU ---
    x = obs.astype(compute_dtype)
    w1 = params["w1"].astype(compute_dtype)
    w2 = params["w2"].astype(compute_dtype)
    w3 = params["w3"].astype(compute_dtype)
    whc = wh.astype(compute_dtype)
    b1, b2, b3 = params["b1"], params["b2"], params["b3"]

    # --- batch tiling: one whole-batch block for small B; otherwise big tiles
    #     (amortize ~600-cycle per-step overhead) with >=2 steps so v7x's two
    #     TensorCores both get work via the "parallel" grid axis. ---
    if B <= tile_b:
        tb = B
        B_pad = B
    else:
        tb = tile_b
        B_pad = ((B + tb - 1) // tb) * tb
    if B_pad != B:
        x = jnp.pad(x, ((0, B_pad - B), (0, 0)))

    grid = (B_pad // tb,)

    def full(arr):
        # whole-array, grid-invariant block (no re-DMA across steps)
        return pl.BlockSpec(arr.shape, lambda i: (0,) * arr.ndim)

    in_specs = [
        pl.BlockSpec((tb, in_ch), lambda i: (i, 0)),   # x tile
        full(w1), full(b1),
        full(w2), full(b2),
        full(w3), full(b3),
        full(whc), full(bh),
    ]
    out_specs = pl.BlockSpec((tb, HEAD_PAD), lambda i: (i, 0))

    q_padded = pl.pallas_call(
        functools.partial(dueling_kernel, num_actions=num_actions),
        out_shape=jax.ShapeDtypeStruct((B_pad, HEAD_PAD), jnp.float32),
        grid=grid,
        in_specs=in_specs,
        out_specs=out_specs,
        compiler_params=pltpu.CompilerParams(
            dimension_semantics=("parallel",)),
    )(x, w1, b1, w2, b2, w3, b3, whc, bh)

    return q_padded[:B, :num_actions]


def init_params(key, in_ch, num_actions):
    """Deterministic init mimicking torch.nn.Linear defaults (U[-1/sqrt(fan_in), +])."""
    def linear(key, fan_in, fan_out):
        kw, kb = jax.random.split(key)
        bound = 1.0 / jnp.sqrt(fan_in)
        # stored already transposed: (fan_in, fan_out) so kernel does x @ W
        w = jax.random.uniform(kw, (fan_in, fan_out), jnp.float32, -bound, bound)
        b = jax.random.uniform(kb, (1, fan_out), jnp.float32, -bound, bound)
        return w, b

    k1, k2, k3, k4, k5 = jax.random.split(key, 5)
    w1, b1 = linear(k1, in_ch, 16)
    w2, b2 = linear(k2, 16, 64)
    w3, b3 = linear(k3, 64, 128)
    wa, ba = linear(k4, 128, num_actions)
    ws, bs = linear(k5, 128, 1)
    return dict(w1=w1, b1=b1, w2=w2, b2=b2, w3=w3, b3=b3,
                wa=wa, ba=ba, ws=ws, bs=bs)


def reference_forward(obs, p):
    """Pure-JAX (f32) reference of the PyTorch forward for correctness checking."""
    h = jnp.maximum(obs @ p["w1"] + p["b1"], 0.0)
    h = jnp.maximum(h @ p["w2"] + p["b2"], 0.0)
    h = jnp.maximum(h @ p["w3"] + p["b3"], 0.0)
    av = h @ p["wa"] + p["ba"]
    sv = h @ p["ws"] + p["bs"]
    return sv + (av - av.mean(axis=-1, keepdims=True))


if __name__ == "__main__":
    key = jax.random.PRNGKey(0)
    k_params, k_obs = jax.random.split(key)

    in_ch, num_actions = 32, 4
    params = init_params(k_params, in_ch, num_actions)

    # --- small-batch path (single whole-batch block), f32 operands: exact check ---
    B_small = 8
    obs_small = jax.random.normal(k_obs, (B_small, in_ch), jnp.float32)
    q_small = jax.block_until_ready(
        dueling_forward(obs_small, params, compute_dtype=jnp.float32))
    q_small_ref = reference_forward(obs_small, params)
    assert q_small.shape == (B_small, num_actions)
    assert jnp.allclose(q_small, q_small_ref, atol=1e-5, rtol=1e-5), "f32 mismatch vs reference"

    # --- large-batch path (4 grid steps, bf16 MXU operands): relaxed tolerance ---
    B_big = 1024
    obs_big = jax.random.normal(jax.random.PRNGKey(1), (B_big, in_ch), jnp.float32)
    q_big = jax.block_until_ready(
        dueling_forward(obs_big, params, tile_b=256, compute_dtype=jnp.bfloat16))
    q_big_ref = reference_forward(obs_big, params)
    assert q_big.shape == (B_big, num_actions)
    assert jnp.allclose(q_big, q_big_ref, atol=5e-2, rtol=5e-2), "bf16 mismatch vs reference"

    print("KERNEL_OK")
</pallas_src>

<mosaic_0001>
module attributes {stable_mosaic.version = 11 : i64} {
  func.func @dueling_kernel(%arg0: i32, %arg1: memref<8x32xf32, #tpu.memory_space<vmem>>, %arg2: memref<32x16xf32, #tpu.memory_space<vmem>>, %arg3: memref<1x16xf32, #tpu.memory_space<vmem>>, %arg4: memref<16x64xf32, #tpu.memory_space<vmem>>, %arg5: memref<1x64xf32, #tpu.memory_space<vmem>>, %arg6: memref<64x128xf32, #tpu.memory_space<vmem>>, %arg7: memref<1x128xf32, #tpu.memory_space<vmem>>, %arg8: memref<128x128xf32, #tpu.memory_space<vmem>>, %arg9: memref<1x128xf32, #tpu.memory_space<vmem>>, %arg10: memref<8x128xf32, #tpu.memory_space<vmem>>) attributes {dimension_semantics = [#tpu.dimension_semantics<parallel>], iteration_bounds = array<i64: 1>, scalar_prefetch = 0 : i64, scratch_operands = 0 : i64, tpu.core_type = #tpu.core_type<tc>, window_params = [{transform_indices = @transform_0, window_bounds = array<i64: 8, 32>}, {pipeline_mode = #tpu.pipeline_mode<synchronous>, transform_indices = @transform_1, window_bounds = array<i64: 32, 16>}, {pipeline_mode = #tpu.pipeline_mode<synchronous>, transform_indices = @transform_2, window_bounds = array<i64: 1, 16>}, {pipeline_mode = #tpu.pipeline_mode<synchronous>, transform_indices = @transform_3, window_bounds = array<i64: 16, 64>}, {pipeline_mode = #tpu.pipeline_mode<synchronous>, transform_indices = @transform_4, window_bounds = array<i64: 1, 64>}, {pipeline_mode = #tpu.pipeline_mode<synchronous>, transform_indices = @transform_5, window_bounds = array<i64: 64, 128>}, {pipeline_mode = #tpu.pipeline_mode<synchronous>, transform_indices = @transform_6, window_bounds = array<i64: 1, 128>}, {pipeline_mode = #tpu.pipeline_mode<synchronous>, transform_indices = @transform_7, window_bounds = array<i64: 128, 128>}, {pipeline_mode = #tpu.pipeline_mode<synchronous>, transform_indices = @transform_8, window_bounds = array<i64: 1, 128>}, {transform_indices = @transform_9, window_bounds = array<i64: 8, 128>}]} {
    %c0 = arith.constant 0 : index
    %c0_0 = arith.constant 0 : index
    %0 = vector.load %arg1[%c0, %c0_0] : memref<8x32xf32, #tpu.memory_space<vmem>>, vector<8x32xf32>
    %c0_1 = arith.constant 0 : index
    %c0_2 = arith.constant 0 : index
    %1 = vector.load %arg2[%c0_1, %c0_2] : memref<32x16xf32, #tpu.memory_space<vmem>>, vector<32x16xf32>
    %cst = arith.constant dense<0.000000e+00> : vector<8x16xf32>
    %2 = tpu.matmul %0, %1, %cst {dimension_numbers = #tpu.dot_dimension_numbers<[1], [0], [0], [1], [0, 0, 1, 1], [], []>} : vector<8x32xf32>, vector<32x16xf32>, vector<8x16xf32> -> vector<8x16xf32>
    %c0_3 = arith.constant 0 : index
    %c0_4 = arith.constant 0 : index
    %3 = vector.load %arg3[%c0_3, %c0_4] : memref<1x16xf32, #tpu.memory_space<vmem>>, vector<1x16xf32>
    %4 = vector.broadcast %3 : vector<1x16xf32> to vector<8x16xf32>
    %5 = arith.addf %2, %4 : vector<8x16xf32>
    %cst_5 = arith.constant 0.000000e+00 : f32
    %6 = vector.broadcast %cst_5 : f32 to vector<8x16xf32>
    %7 = arith.maximumf %5, %6 : vector<8x16xf32>
    %c0_6 = arith.constant 0 : index
    %c0_7 = arith.constant 0 : index
    %8 = vector.load %arg4[%c0_6, %c0_7] : memref<16x64xf32, #tpu.memory_space<vmem>>, vector<16x64xf32>
    %cst_8 = arith.constant dense<0.000000e+00> : vector<8x64xf32>
    %9 = tpu.matmul %7, %8, %cst_8 {dimension_numbers = #tpu.dot_dimension_numbers<[1], [0], [0], [1], [0, 0, 1, 1], [], []>} : vector<8x16xf32>, vector<16x64xf32>, vector<8x64xf32> -> vector<8x64xf32>
    %c0_9 = arith.constant 0 : index
    %c0_10 = arith.constant 0 : index
    %10 = vector.load %arg5[%c0_9, %c0_10] : memref<1x64xf32, #tpu.memory_space<vmem>>, vector<1x64xf32>
    %11 = vector.broadcast %10 : vector<1x64xf32> to vector<8x64xf32>
    %12 = arith.addf %9, %11 : vector<8x64xf32>
    %cst_11 = arith.constant 0.000000e+00 : f32
    %13 = vector.broadcast %cst_11 : f32 to vector<8x64xf32>
    %14 = arith.maximumf %12, %13 : vector<8x64xf32>
    %c0_12 = arith.constant 0 : index
    %c0_13 = arith.constant 0 : index
    %15 = vector.load %arg6[%c0_12, %c0_13] : memref<64x128xf32, #tpu.memory_space<vmem>>, vector<64x128xf32>
    %cst_14 = arith.constant dense<0.000000e+00> : vector<8x128xf32>
    %16 = tpu.matmul %14, %15, %cst_14 {dimension_numbers = #tpu.dot_dimension_numbers<[1], [0], [0], [1], [0, 0, 1, 1], [], []>} : vector<8x64xf32>, vector<64x128xf32>, vector<8x128xf32> -> vector<8x128xf32>
    %c0_15 = arith.constant 0 : index
    %c0_16 = arith.constant 0 : index
    %17 = vector.load %arg7[%c0_15, %c0_16] : memref<1x128xf32, #tpu.memory_space<vmem>>, vector<1x128xf32>
    %18 = vector.broadcast %17 : vector<1x128xf32> to vector<8x128xf32>
    %19 = arith.addf %16, %18 : vector<8x128xf32>
    %cst_17 = arith.constant 0.000000e+00 : f32
    %20 = vector.broadcast %cst_17 : f32 to vector<8x128xf32>
    %21 = arith.maximumf %19, %20 : vector<8x128xf32>
    %c0_18 = arith.constant 0 : index
    %c0_19 = arith.constant 0 : index
    %22 = vector.load %arg8[%c0_18, %c0_19] : memref<128x128xf32, #tpu.memory_space<vmem>>, vector<128x128xf32>
    %cst_20 = arith.constant dense<0.000000e+00> : vector<8x128xf32>
    %23 = tpu.matmul %21, %22, %cst_20 {dimension_numbers = #tpu.dot_dimension_numbers<[1], [0], [0], [1], [0, 0, 1, 1], [], []>} : vector<8x128xf32>, vector<128x128xf32>, vector<8x128xf32> -> vector<8x128xf32>
    %c0_21 = arith.constant 0 : index
    %c0_22 = arith.constant 0 : index
    %24 = vector.load %arg9[%c0_21, %c0_22] : memref<1x128xf32, #tpu.memory_space<vmem>>, vector<1x128xf32>
    %25 = vector.broadcast %24 : vector<1x128xf32> to vector<8x128xf32>
    %26 = arith.addf %23, %25 : vector<8x128xf32>
    %27 = tpu.iota {dimensions = array<i32: 1>} : vector<8x128xi32>
    %c4_i32 = arith.constant 4 : i32
    %28 = vector.broadcast %c4_i32 : i32 to vector<8x128xi32>
    %29 = arith.cmpi slt, %27, %28 : vector<8x128xi32>
    %c4_i32_23 = arith.constant 4 : i32
    %30 = vector.broadcast %c4_i32_23 : i32 to vector<8x128xi32>
    %31 = arith.cmpi eq, %27, %30 : vector<8x128xi32>
    %cst_24 = arith.constant 0.000000e+00 : f32
    %32 = vector.broadcast %cst_24 : f32 to vector<8x128xf32>
    %33 = arith.select %29, %26, %32 : vector<8x128xi1>, vector<8x128xf32>
    %cst_25 = arith.constant dense<0.000000e+00> : vector<8xf32>
    %34 = vector.multi_reduction <add>, %33, %cst_25 [1] : vector<8x128xf32> to vector<8xf32>
    %35 = vector.shape_cast %34 : vector<8xf32> to vector<8x1xf32>
    %cst_26 = arith.constant 2.500000e-01 : f32
    %36 = vector.broadcast %cst_26 : f32 to vector<8x1xf32>
    %37 = arith.mulf %35, %36 : vector<8x1xf32>
    %cst_27 = arith.constant 0.000000e+00 : f32
    %38 = vector.broadcast %cst_27 : f32 to vector<8x128xf32>
    %39 = arith.select %31, %26, %38 : vector<8x128xi1>, vector<8x128xf32>
    %cst_28 = arith.constant dense<0.000000e+00> : vector<8xf32>
    %40 = vector.multi_reduction <add>, %39, %cst_28 [1] : vector<8x128xf32> to vector<8xf32>
    %41 = vector.shape_cast %40 : vector<8xf32> to vector<8x1xf32>
    %42 = vector.broadcast %37 : vector<8x1xf32> to vector<8x128xf32>
    %43 = arith.subf %26, %42 : vector<8x128xf32>
    %44 = vector.broadcast %41 : vector<8x1xf32> to vector<8x128xf32>
    %45 = arith.addf %43, %44 : vector<8x128xf32>
    %cst_29 = arith.constant 0.000000e+00 : f32
    %46 = vector.broadcast %cst_29 : f32 to vector<8x128xf32>
    %47 = arith.select %29, %45, %46 : vector<8x128xi1>, vector<8x128xf32>
    %c0_30 = arith.constant 0 : index
    %c0_31 = arith.constant 0 : index
    %48 = vector.load %arg10[%c0_30, %c0_31] : memref<8x128xf32, #tpu.memory_space<vmem>>, vector<8x128xf32>
    tpu.vector_store %arg10[%c0_30, %c0_31], %47 {strides = array<i32>} : memref<8x128xf32, #tpu.memory_space<vmem>>, vector<8x128xf32>,
    return
  }
  func.func @transform_0(%arg0: i32) -> (i32, i32) {
    %c0_i32 = arith.constant 0 : i32
    %c0_i32_0 = arith.constant 0 : i32
    return %arg0, %c0_i32 : i32, i32
  }
  func.func @transform_1(%arg0: i32) -> (i32, i32) {
    %c0_i32 = arith.constant 0 : i32
    %c0_i32_0 = arith.constant 0 : i32
    %c0_i32_1 = arith.constant 0 : i32
    return %c0_i32, %c0_i32_0 : i32, i32
  }
  func.func @transform_2(%arg0: i32) -> (i32, i32) {
    %c0_i32 = arith.constant 0 : i32
    %c0_i32_0 = arith.constant 0 : i32
    %c0_i32_1 = arith.constant 0 : i32
    return %c0_i32, %c0_i32_0 : i32, i32
  }
  func.func @transform_3(%arg0: i32) -> (i32, i32) {
    %c0_i32 = arith.constant 0 : i32
    %c0_i32_0 = arith.constant 0 : i32
    %c0_i32_1 = arith.constant 0 : i32
    return %c0_i32, %c0_i32_0 : i32, i32
  }
  func.func @transform_4(%arg0: i32) -> (i32, i32) {
    %c0_i32 = arith.constant 0 : i32
    %c0_i32_0 = arith.constant 0 : i32
    %c0_i32_1 = arith.constant 0 : i32
    return %c0_i32, %c0_i32_0 : i32, i32
  }
  func.func @transform_5(%arg0: i32) -> (i32, i32) {
    %c0_i32 = arith.constant 0 : i32
    %c0_i32_0 = arith.constant 0 : i32
    %c0_i32_1 = arith.constant 0 : i32
    return %c0_i32, %c0_i32_0 : i32, i32
  }
  func.func @transform_6(%arg0: i32) -> (i32, i32) {
    %c0_i32 = arith.constant 0 : i32
    %c0_i32_0 = arith.constant 0 : i32
    %c0_i32_1 = arith.constant 0 : i32
    return %c0_i32, %c0_i32_0 : i32, i32
  }
  func.func @transform_7(%arg0: i32) -> (i32, i32) {
    %c0_i32 = arith.constant 0 : i32
    %c0_i32_0 = arith.constant 0 : i32
    %c0_i32_1 = arith.constant 0 : i32
    return %c0_i32, %c0_i32_0 : i32, i32
  }
  func.func @transform_8(%arg0: i32) -> (i32, i32) {
    %c0_i32 = arith.constant 0 : i32
    %c0_i32_0 = arith.constant 0 : i32
    %c0_i32_1 = arith.constant 0 : i32
    return %c0_i32, %c0_i32_0 : i32, i32
  }
  func.func @transform_9(%arg0: i32) -> (i32, i32) {
    %c0_i32 = arith.constant 0 : i32
    %c0_i32_0 = arith.constant 0 : i32
    return %arg0, %c0_i32 : i32, i32
  }
}

</mosaic_0001>

<llo_original>
// kernel: tpu_custom_call.1
$region0: #{tpu_custom_call.1}
  #allocation0 [shape = 'u32[]', space=smem, size = 0x4, offset = 0x4, fixed_abs, tag = 'smem constant byte address 0x4 - core index']
  #allocation1 [shape = 'u32[72,128]{1,0:T(1,128)}', space=vmem, size = 0x9000, scoped, tag = 'internal scratch']
  %s0 = inlined_call_operand.vmem [shape: f32[8,32], index: 0, kind: input, shape index: {}]
  %s1 = inlined_call_operand.vmem [shape: f32[32,16], index: 1, kind: input, shape index: {}]
  %s2 = inlined_call_operand.vmem [shape: f32[1,16], index: 2, kind: input, shape index: {}]
  %s3 = inlined_call_operand.vmem [shape: f32[16,64], index: 3, kind: input, shape index: {}]
  %s4 = inlined_call_operand.vmem [shape: f32[1,64], index: 4, kind: input, shape index: {}]
  %s5 = inlined_call_operand.hbm [shape: f32[64,128], index: 5, kind: input, shape index: {}]
  %s6 = inlined_call_operand.vmem [shape: f32[1,128], index: 6, kind: input, shape index: {}]
  %s7 = inlined_call_operand.hbm [shape: f32[128,128], index: 7, kind: input, shape index: {}]
  %s8 = inlined_call_operand.vmem [shape: f32[1,128], index: 8, kind: input, shape index: {}]
  %s9 = inlined_call_operand.hbm [shape: f32[8,128], index: 9, kind: output, shape index: {}]
  %s10 = sld [smem:[#allocation0]]
  $region54: #{tpu_custom_call.1} parent=0
    _
  %s12 = ssub.s32 1, %s10
  %s13 = scalar_select 0, %s12, %s10
  $region1: #{tpu_custom_call.1} parent=0
    #allocation2 [shape = 'u8[32768]{0}', space=vmem, size = 0x8000, scoped, tag = 'input window, operand 5, single buffered']
    #allocation3 [shape = 's32[1]{0}', space=sflag, size = 0x4, scoped, tag = 'scoped memory for tpu_custom_call.1']
    #allocation4 [shape = 's32[1]{0}', space=sflag, size = 0x4, scoped, tag = 'scoped memory for tpu_custom_call.1']
    #allocation5 [shape = 'u8[65536]{0}', space=vmem, size = 0x10000, scoped, tag = 'input window, operand 7, single buffered']
    #allocation6 [shape = 's32[1]{0}', space=sflag, size = 0x4, scoped, tag = 'scoped memory for tpu_custom_call.1']
    #allocation7 [shape = 'u8[4096]{0}', space=vmem, size = 0x1000, scoped, tag = 'output window, operand 0, single buffered']
    %14 = vsyncpa [#allocation3], 0
    %15 = vsyncpa [#allocation6], 0
    %16 = vsyncpa [#allocation4], 0
    // Predicated region
    $region2: #{tpu_custom_call.1} parent=1 // pred_check
      _
    $region3: #{tpu_custom_call.1} parent=1 // pred_check_branch
      %18 = sbr.rel (0) target = $region5
    $region4: #{tpu_custom_call.1} parent=1 // pred_region
      _
    $region5: #{tpu_custom_call.1} parent=1 // pred_fallthru
      _
    // Predicated region
    $region6: #{tpu_custom_call.1} parent=1 // pred_check
      _
    $region7: #{tpu_custom_call.1} parent=1 // pred_check_branch
      %20 = sbr.rel (0) target = $region9
    $region8: #{tpu_custom_call.1} parent=1 // pred_region
      _
    $region9: #{tpu_custom_call.1} parent=1 // pred_fallthru
      _
    // Predicated region
    $region10: #{tpu_custom_call.1} parent=1 // pred_check
      _
    $region11: #{tpu_custom_call.1} parent=1 // pred_check_branch
      %22 = sbr.rel (0) target = $region13
    $region12: #{tpu_custom_call.1} parent=1 // pred_region
      _
    $region13: #{tpu_custom_call.1} parent=1 // pred_fallthru
      _
    // Predicated region
    $region14: #{tpu_custom_call.1} parent=1 // pred_check
      _
    $region15: #{tpu_custom_call.1} parent=1 // pred_check_branch
      %24 = sbr.rel (0) target = $region17
    $region16: #{tpu_custom_call.1} parent=1 // pred_region
      _
    $region17: #{tpu_custom_call.1} parent=1 // pred_fallthru
      _
    // Predicated region
    $region18: #{tpu_custom_call.1} parent=1 // pred_check
      _
    $region19: #{tpu_custom_call.1} parent=1 // pred_check_branch
      %26 = sbr.rel (0) target = $region21
    $region20: #{tpu_custom_call.1} parent=1 // pred_region
      _
    $region21: #{tpu_custom_call.1} parent=1 // pred_fallthru
      _
    // Predicated region
    $region22: #{tpu_custom_call.1} parent=1 // pred_check
      _
    $region23: #{tpu_custom_call.1} parent=1 // pred_check_branch
      %28 = sbr.rel (0) target = $region25
    $region24: #{tpu_custom_call.1} parent=1 // pred_region
      %30 = vsyncadd [#allocation3], 0
      %s31 = sshll.u32 %s5, 4
      %s32 = int_to_ptr.hbm [resolvable:$true] %s31
      %s33 = sshll.u32 [#allocation2], 4
      %s34 = int_to_ptr.vmem [resolvable:$true] %s33
      %39 = dma.hbm_to_vmem [thread:$0]  %s32, 1024, %s34, [#allocation3], 128, 128, 8
    $region25: #{tpu_custom_call.1} parent=1 // pred_fallthru
      _
    // Predicated region
    $region26: #{tpu_custom_call.1} parent=1 // pred_check
      _
    $region27: #{tpu_custom_call.1} parent=1 // pred_check_branch
      %41 = sbr.rel (0) target = $region29
    $region28: #{tpu_custom_call.1} parent=1 // pred_region
      _
    $region29: #{tpu_custom_call.1} parent=1 // pred_fallthru
      _
    // Predicated region
    $region30: #{tpu_custom_call.1} parent=1 // pred_check
      _
    $region31: #{tpu_custom_call.1} parent=1 // pred_check_branch
      %43 = sbr.rel (0) target = $region33
    $region32: #{tpu_custom_call.1} parent=1 // pred_region
      %45 = vsyncadd [#allocation6], 0
      %s46 = sshll.u32 %s7, 4
      %s47 = int_to_ptr.hbm [resolvable:$true] %s46
      %s48 = sshll.u32 [#allocation5], 4
      %s49 = int_to_ptr.vmem [resolvable:$true] %s48
      %54 = dma.hbm_to_vmem [thread:$0]  %s47, 2048, %s49, [#allocation6], 128, 128, 8
    $region33: #{tpu_custom_call.1} parent=1 // pred_fallthru
      _
    // Predicated region
    $region34: #{tpu_custom_call.1} parent=1 // pred_check
      _
    $region35: #{tpu_custom_call.1} parent=1 // pred_check_branch
      %56 = sbr.rel (0) target = $region37
    $region36: #{tpu_custom_call.1} parent=1 // pred_region
      _
    $region37: #{tpu_custom_call.1} parent=1 // pred_fallthru
      _
    // Predicated region
    $region38: #{tpu_custom_call.1} parent=1 // pred_check
      _
    $region39: #{tpu_custom_call.1} parent=1 // pred_check_branch
      %58 = sbr.rel (0) target = $region41
    $region40: #{tpu_custom_call.1} parent=1 // pred_region
      %60 = dma.done [#allocation3], 1024
    $region41: #{tpu_custom_call.1} parent=1 // pred_fallthru
      _
    // Predicated region
    $region42: #{tpu_custom_call.1} parent=1 // pred_check
      _
    $region43: #{tpu_custom_call.1} parent=1 // pred_check_branch
      %62 = sbr.rel (0) target = $region45
    $region44: #{tpu_custom_call.1} parent=1 // pred_region
      %64 = dma.done [#allocation6], 2048
    $region45: #{tpu_custom_call.1} parent=1 // pred_fallthru
      _
    %v65 = vld [vmem:[%s0] sm:$0xff]
    %v66 = vld [vmem:[%s1] sm:$0xff]
    %v67 = vld [vmem:[%s1 + $0x8] sm:$0xff]
    %v68 = vld [vmem:[%s1 + $0x10] sm:$0xff]
    %v69 = vld [vmem:[%s1 + $0x18] sm:$0xff]
    %v70 = vld [vmem:[%s2] sm:$0x1]
    %v72 = vperm.slane %v70, 0
    %vm74 = vcmask 261120
    %v76 = vsel %vm74, %v65, 0
    %78 = vmatpush.msra.mxu0 0.0
    %79 = vmatpush.msra.mxu0 0.0
    %80 = vmatpush.msra.mxu0 0.0
    %81 = vmatpush.msra.mxu0 0.0
    %82 = vmatpush.msra.mxu0 0.0
    %83 = vmatpush.msra.mxu0 0.0
    %84 = vmatpush.msra.mxu0 0.0
    %85 = vmatpush.msra.mxu0 0.0
    %86 = vmatpush.msra.mxu0 0.0
    %87 = vmatpush.msra.mxu0 0.0
    %88 = vmatpush.msra.mxu0 0.0
    %89 = vmatpush.msra.mxu0 0.0
    %90 = vmatpush.msra.mxu0 %v69
    %91 = vmatpush.msra.mxu0 %v68
    %92 = vmatpush.msra.mxu0 %v67
    %93 = vmatpush.msra.mxu0 %v66
    %94 = vmatmul.f32.gmra.mxu0 %v76
    %v95 = vpop.f32.mrf.mxu0
    %v96 = vadd.f32 %v72, %v95
    %97 = vdwg.mxu0
    %v98 = vmax.f32 %v96, 0.0
    %v99 = vld [vmem:[%s3] sm:$0xff]
    %v100 = vld [vmem:[%s3 + $0x8] sm:$0xff]
    %v101 = vld [vmem:[%s4] sm:$0x1]
    %v103 = vperm.slane %v101, 0
    %vm105 = vcmask 130048
    %v107 = vsel %vm105, %v98, 0
    %109 = vmatpush.msra.mxu0 0.0
    %110 = vmatpush.msra.mxu0 0.0
    %111 = vmatpush.msra.mxu0 0.0
    %112 = vmatpush.msra.mxu0 0.0
    %113 = vmatpush.msra.mxu0 0.0
    %114 = vmatpush.msra.mxu0 0.0
    %115 = vmatpush.msra.mxu0 0.0
    %116 = vmatpush.msra.mxu0 0.0
    %117 = vmatpush.msra.mxu0 0.0
    %118 = vmatpush.msra.mxu0 0.0
    %119 = vmatpush.msra.mxu0 0.0
    %120 = vmatpush.msra.mxu0 0.0
    %121 = vmatpush.msra.mxu0 0.0
    %122 = vmatpush.msra.mxu0 0.0
    %123 = vmatpush.msra.mxu0 %v100
    %124 = vmatpush.msra.mxu0 %v99
    %125 = vmatmul.f32.gmra.mxu0 %v107
    %v126 = vpop.f32.mrf.mxu0
    %v127 = vadd.f32 %v103, %v126
    %128 = vdwg.mxu0
    %v129 = vmax.f32 %v127, 0.0
    %v130 = vld [vmem:[#allocation2] sm:$0xff]
    %v131 = vld [vmem:[#allocation2 + $0x8] sm:$0xff]
    %v132 = vld [vmem:[#allocation2 + $0x10] sm:$0xff]
    %v133 = vld [vmem:[#allocation2 + $0x18] sm:$0xff]
    %v134 = vld [vmem:[#allocation2 + $0x20] sm:$0xff]
    %v135 = vld [vmem:[#allocation2 + $0x28] sm:$0xff]
    %v136 = vld [vmem:[#allocation2 + $0x30] sm:$0xff]
    %v137 = vld [vmem:[#allocation2 + $0x38] sm:$0xff]
    %v138 = vld [vmem:[%s6] sm:$0x1]
    %v140 = vperm.slane %v138, 0
    %vm142 = vcmask 523264
    %v144 = vsel %vm142, %v129, 0
    %146 = vmatpush.msra.mxu0 0.0
    %147 = vmatpush.msra.mxu0 0.0
    %148 = vmatpush.msra.mxu0 0.0
    %149 = vmatpush.msra.mxu0 0.0
    %150 = vmatpush.msra.mxu0 0.0
    %151 = vmatpush.msra.mxu0 0.0
    %152 = vmatpush.msra.mxu0 0.0
    %153 = vmatpush.msra.mxu0 0.0
    %154 = vmatpush.msra.mxu0 %v137
    %155 = vmatpush.msra.mxu0 %v136
    %156 = vmatpush.msra.mxu0 %v135
    %157 = vmatpush.msra.mxu0 %v134
    %158 = vmatpush.msra.mxu0 %v133
    %159 = vmatpush.msra.mxu0 %v132
    %160 = vmatpush.msra.mxu0 %v131
    %161 = vmatpush.msra.mxu0 %v130
    %162 = vmatmul.f32.gmra.mxu0 %v144
    %v163 = vpop.f32.mrf.mxu0
    %v164 = vadd.f32 %v140, %v163
    %165 = vdwg.mxu0
    %v166 = vmax.f32 %v164, 0.0
    %v167 = vld [vmem:[#allocation5] sm:$0xff]
    %v168 = vld [vmem:[#allocation5 + $0x8] sm:$0xff]
    %v169 = vld [vmem:[#allocation5 + $0x10] sm:$0xff]
    %v170 = vld [vmem:[#allocation5 + $0x18] sm:$0xff]
    %v171 = vld [vmem:[#allocation5 + $0x20] sm:$0xff]
    %v172 = vld [vmem:[#allocation5 + $0x28] sm:$0xff]
    %v173 = vld [vmem:[#allocation5 + $0x30] sm:$0xff]
    %v174 = vld [vmem:[#allocation5 + $0x38] sm:$0xff]
    %v175 = vld [vmem:[#allocation5 + $0x40] sm:$0xff]
    %v176 = vld [vmem:[#allocation5 + $0x48] sm:$0xff]
    %v177 = vld [vmem:[#allocation5 + $0x50] sm:$0xff]
    %v178 = vld [vmem:[#allocation5 + $0x58] sm:$0xff]
    %v179 = vld [vmem:[#allocation5 + $0x60] sm:$0xff]
    %v180 = vld [vmem:[#allocation5 + $0x68] sm:$0xff]
    %v181 = vld [vmem:[#allocation5 + $0x70] sm:$0xff]
    %v182 = vld [vmem:[#allocation5 + $0x78] sm:$0xff]
    %v183 = vld [vmem:[%s8] sm:$0x1]
    %v185 = vperm.slane %v183, 0
    %187 = vmatpush.msra.mxu0 %v182
    %188 = vmatpush.msra.mxu0 %v181
    %189 = vmatpush.msra.mxu0 %v180
    %190 = vmatpush.msra.mxu0 %v179
    %191 = vmatpush.msra.mxu0 %v178
    %192 = vmatpush.msra.mxu0 %v177
    %193 = vmatpush.msra.mxu0 %v176
    %194 = vmatpush.msra.mxu0 %v175
    %195 = vmatpush.msra.mxu0 %v174
    %196 = vmatpush.msra.mxu0 %v173
    %197 = vmatpush.msra.mxu0 %v172
    %198 = vmatpush.msra.mxu0 %v171
    %199 = vmatpush.msra.mxu0 %v170
    %200 = vmatpush.msra.mxu0 %v169
    %201 = vmatpush.msra.mxu0 %v168
    %202 = vmatpush.msra.mxu0 %v167
    %203 = vmatmul.f32.gmra.mxu0 %v166
    %v204 = vpop.f32.mrf.mxu0
    %v205 = vadd.f32 %v185, %v204
    %206 = vdwg.mxu0
    %v207 = vlaneseq
    %v208 = vand.u32 %v207, 127
    %vm209 = vcmp.lt.s32.totalorder %v208, 4
    %vm210 = vcmp.eq.s32.totalorder %v208, 4
    %v211 = vsel %vm209, %v205, 0.0
    %212 = vadd.xlane.f32.xlu0 %v211
    %v213 = vpop.xlane.xlu0 %212
    %v214 = vmul.f32 %v213, 0.25
    %v215 = vsel %vm210, %v205, 0.0
    %216 = vadd.xlane.f32.xlu0 %v215
    %v217 = vpop.xlane.xlu0 %216
    %v218 = vsub.f32 %v205, %v214
    %v219 = vadd.f32 %v218, %v217
    %v220 = vsel %vm209, %v219, 0.0
    %221 = vst [vmem:[#allocation7] sm:$0xff] %v220
    // Predicated region
    $region46: #{tpu_custom_call.1} parent=1 // pred_check
      _
    $region47: #{tpu_custom_call.1} parent=1 // pred_check_branch
      %223 = sbr.rel (0) target = $region49
    $region48: #{tpu_custom_call.1} parent=1 // pred_region
      %225 = vsyncadd [#allocation4], 0
      %s227 = sshll.u32 [#allocation7], 4
      %s228 = int_to_ptr.vmem [resolvable:$true] %s227
      %s229 = sshll.u32 %s9, 4
      %s230 = int_to_ptr.hbm [resolvable:$true] %s229
      %232 = dma.vmem_to_hbm [thread:$0]  %s228, 128, %s230, [#allocation4]
    $region49: #{tpu_custom_call.1} parent=1 // pred_fallthru
      _
    // Predicated region
    $region50: #{tpu_custom_call.1} parent=1 // pred_check
      _
    $region51: #{tpu_custom_call.1} parent=1 // pred_check_branch
      %234 = sbr.rel (0) target = $region53
    $region52: #{tpu_custom_call.1} parent=1 // pred_region
      %236 = dma.done [#allocation4], 128
    $region53: #{tpu_custom_call.1} parent=1 // pred_fallthru
      _
    %237 = vsyncpa [#allocation3], 1
    %238 = vsyncpa [#allocation6], 1
    %239 = vsyncpa [#allocation4], 1

</llo_original>
